<compile_context>
chip_gen: v5e
topology: v5e:2x2
jax: 0.10.0
libtpu: 0.0.40
codegen_flags: <defaults>
</compile_context>

<pallas_src>
import functools

import jax
import jax.numpy as jnp
from jax.experimental import pallas as pl
from jax.experimental.pallas import tpu as pltpu


# 3x3 tap order shared by wrapper (weights/masks) and kernel (rolls).
_TAPS = tuple((di, dj) for di in (-1, 0, 1) for dj in (-1, 0, 1))

# pltpu.roll follows the jnp.roll convention (out[i] == in[i - shift]).  The
# probe below (run eagerly in __main__) confirms it; the kernel defaults to
# this documented convention even if the probe was never run.
_ROLL_IS_JNP_LIKE = None


def _detect_roll_direction():
    """One-time eager probe of pltpu.roll's rotate direction (call outside jit)."""
    global _ROLL_IS_JNP_LIKE
    if _ROLL_IS_JNP_LIKE is None:
        def probe_kernel(x_ref, o_ref):
            o_ref[...] = pltpu.roll(x_ref[...], 1, 1)

        x = jax.lax.broadcasted_iota(jnp.float32, (8, 128), 1)
        y = pl.pallas_call(
            probe_kernel,
            out_shape=jax.ShapeDtypeStruct((8, 128), jnp.float32),
        )(x)
        _ROLL_IS_JNP_LIKE = bool(jax.device_get(y)[0, 1] == 0.0)
    return _ROLL_IS_JNP_LIKE


def _make_ema_kernel(h, w, cg, r_w, n_chunks, roll_jnp_like):
    hw_n = h * w
    eps = 1e-5

    def kernel(x_ref, phw_ref, eh_ref, ew_ref, w1_ref, w3_ref,
               gsum_ref, gexp_ref, scal_ref, mask9_ref, o_ref):
        f32 = jnp.float32

        # Packed per-row scalars (identical layout for every r_w-row chunk):
        # [b1, b3, gn_w, gn_b, softmax(gn_b)].
        b1c = scal_ref[:, 0:1]
        b3c = scal_ref[:, 1:2]
        gnw = scal_ref[:, 2:3]
        gnb = scal_ref[:, 3:4]
        s1 = scal_ref[:, 4:5]          # GN-branch channel softmax (constant)
        gsum = gsum_ref[...]           # (t_w, r_w) per-group row-sum matrix
        gexp = gexp_ref[...]           # (r_w, t_w) per-group broadcast matrix
        # 1/HW reduction column (splat constant) -> row reductions on the MXU.
        mean_col = jnp.full((hw_n, 1), 1.0 / hw_n, dtype=f32)

        # Static chunk loop: the same (r_w x r_w) block-diag weights are reused
        # for every r_w-row chunk of this grid block.
        for ci in range(n_chunks):
            r0 = ci * r_w
            gx = x_ref[r0:r0 + r_w, :].astype(f32)               # (r_w, HW)

            # ---- directional pooling (mean over W | mean over H) as one matmul
            pooled = jnp.dot(gx, phw_ref[...],
                             preferred_element_type=f32)         # (r_w, H+W)

            # ---- conv1x1 (block-diag across groups) + bias + sigmoid ----
            strip = jnp.dot(w1_ref[...], pooled,
                            preferred_element_type=f32) + b1c    # (r_w, H+W)
            sig = jax.nn.sigmoid(strip)
            # expand H-strip over W lanes / W-strip over H rows (0/1 matrices)
            xh_full = jnp.dot(sig, eh_ref[...], preferred_element_type=f32)
            xw_full = jnp.dot(sig, ew_ref[...], preferred_element_type=f32)

            # ---- GroupNorm (num_groups == num_channels) of modulated input ---
            m = gx * xh_full * xw_full
            mu = jnp.dot(m, mean_col, preferred_element_type=f32)       # (r_w,1)
            msq = jnp.dot(m * m, mean_col, preferred_element_type=f32)  # (r_w,1)
            var = msq - mu * mu
            x1 = (m - mu) * jax.lax.rsqrt(var + eps) * gnw + gnb        # (r_w,HW)

            # ---- conv3x3 (padding=1): 9 lane rolls, 0/1-mask mul, per-tap acc
            x2 = None
            for k, (di, dj) in enumerate(_TAPS):
                d = di * w + dj
                if d == 0:
                    v = gx                              # centre tap: mask is all-ones
                else:
                    shift = (-d) % hw_n if roll_jnp_like else d % hw_n
                    v = pltpu.roll(gx, shift, 1) * mask9_ref[k:k + 1, :]
                contrib = jnp.dot(w3_ref[k], v, preferred_element_type=f32)
                x2 = contrib if x2 is None else x2 + contrib
            x2 = x2 + b3c                                                # (r_w,HW)

            # ---- cross-branch channel attention ----
            # s1 = softmax(mean_HW(x1)) == softmax(gn_b): precomputed (wrapper).
            # s2 = per-group softmax of mean_HW(x2), stabilized by group mean.
            a2 = jnp.dot(x2, mean_col, preferred_element_type=f32)      # (r_w,1)
            stab = jnp.dot(gexp,
                           jnp.dot(gsum, a2, preferred_element_type=f32),
                           preferred_element_type=f32) * (1.0 / cg)
            e2 = jnp.exp(a2 - stab)
            den = jnp.dot(gexp,
                          jnp.dot(gsum, e2, preferred_element_type=f32),
                          preferred_element_type=f32)
            s2 = e2 / den

            scaled = s1 * x2 + s2 * x1                                   # (r_w,HW)
            wsum = jnp.dot(gsum, scaled, preferred_element_type=f32)     # (t_w,HW)
            gate = jax.nn.sigmoid(wsum)
            gate_full = jnp.dot(gexp, gate, preferred_element_type=f32)  # (r_w,HW)

            o_ref[r0:r0 + r_w, :] = (gx * gate_full).astype(o_ref.dtype)

    return kernel


def ema_forward(x, w1, b1, w3, b3, gn_w, gn_b, groups=8):
    b, c, h, w = x.shape
    assert c % groups == 0 and c // groups > 0
    cg = c // groups
    bg = b * groups
    hw_n = h * w
    rows_total = bg * cg
    f32 = jnp.float32

    # Lane-dense working layout: one row per (batch, group, channel), H*W lanes.
    gx_flat = x.reshape(rows_total, hw_n)

    # ---- tiling: fixed weight span r_w (~128 rows); the kernel loops over
    # r_w-row chunks; grid sized so each "parallel" step moves >= ~512 KiB. ----
    t_w = min(bg, max(1, 128 // cg))       # groups covered by one weight chunk
    while bg % t_w:
        t_w -= 1
    r_w = t_w * cg
    n_chunks_total = bg // t_w
    bytes_per_chunk = r_w * hw_n * 4
    target_step_bytes = 512 * 1024
    n_tiles = 1
    for cand in range(n_chunks_total, 0, -1):
        if (n_chunks_total % cand == 0 and
                (n_chunks_total // cand) * bytes_per_chunk >= target_step_bytes):
            n_tiles = cand
            break
    # NOTE: a generation-aware pick (v7x: keep >=2 "parallel" steps so both
    # TensorCores get work; v5e/v6e: single TC, grid=(1,) when it fits) could
    # use pltpu.get_tpu_info(); the size heuristic above collapses the tiny
    # demo to grid=(1,) which is the right call on single-TC parts.
    n_chunks = n_chunks_total // n_tiles
    r = n_chunks * r_w                     # data-block rows per grid step
    if n_tiles > 1 and r % 8 != 0:         # respect the (8,128) block-shape rule
        n_tiles, n_chunks, r = 1, n_chunks_total, n_chunks_total * r_w

    # ---- constant matrices (trace-time, all sized to one r_w-row chunk) ----
    s_idx = jnp.arange(hw_n)
    row = s_idx // w
    col = s_idx % w

    p_h = (row[:, None] == jnp.arange(h)[None, :]).astype(f32) / w      # (HW,H)
    p_w = (col[:, None] == jnp.arange(w)[None, :]).astype(f32) / h      # (HW,W)
    p_hw = jnp.concatenate([p_h, p_w], axis=1)                          # (HW,H+W)

    e_h = (jnp.arange(h)[:, None] == row[None, :]).astype(f32)          # (H,HW)
    e_w = (jnp.arange(w)[:, None] == col[None, :]).astype(f32)          # (W,HW)
    eh_pad = jnp.concatenate([e_h, jnp.zeros((w, hw_n), f32)], axis=0)  # (H+W,HW)
    ew_pad = jnp.concatenate([jnp.zeros((h, hw_n), f32), e_w], axis=0)  # (H+W,HW)

    eye_tw = jnp.eye(t_w, dtype=f32)
    w1_bd = jnp.kron(eye_tw, w1.astype(f32))                            # (r_w,r_w)
    w3_k = jnp.transpose(w3.astype(f32), (2, 3, 0, 1)).reshape(9, cg, cg)
    w3_bd = jnp.stack([jnp.kron(eye_tw, w3_k[k]) for k in range(9)])    # (9,r_w,r_w)

    grp = jnp.arange(r_w) // cg
    g_sum = (jnp.arange(t_w)[:, None] == grp[None, :]).astype(f32)      # (t_w,r_w)
    g_exp = g_sum.T                                                     # (r_w,t_w)

    # Packed per-row scalars: [b1, b3, gn_w, gn_b, softmax(gn_b)].
    # mean_{HW}(GN(x)) == gn_b exactly, so the GN-branch channel softmax is the
    # constant softmax(gn_b) per group (computed here, not in the kernel).
    s1_vec = jax.nn.softmax(gn_b.astype(f32))
    scal = jnp.stack([jnp.tile(b1.astype(f32), t_w),
                      jnp.tile(b3.astype(f32), t_w),
                      jnp.tile(gn_w.astype(f32), t_w),
                      jnp.tile(gn_b.astype(f32), t_w),
                      jnp.tile(s1_vec, t_w)], axis=1)                   # (r_w,5)

    mask_rows = []
    for di, dj in _TAPS:
        valid = jnp.ones((hw_n,), dtype=bool)
        if di == -1:
            valid = valid & (row >= 1)
        elif di == 1:
            valid = valid & (row < h - 1)
        if dj == -1:
            valid = valid & (col >= 1)
        elif dj == 1:
            valid = valid & (col < w - 1)
        mask_rows.append(valid)
    mask9 = jnp.stack(mask_rows).astype(f32)                            # (9,HW)

    roll_jnp_like = _ROLL_IS_JNP_LIKE if _ROLL_IS_JNP_LIKE is not None else True
    kernel = _make_ema_kernel(h, w, cg, r_w, n_chunks, roll_jnp_like)

    def const_spec(shape):
        n = len(shape)
        return pl.BlockSpec(shape, lambda i, n=n: (0,) * n)

    # Advisory cost estimate for XLA's scheduler around the custom call.
    flops = n_chunks_total * (
        2 * r_w * hw_n * (h + w)          # directional pooling
        + 2 * r_w * r_w * (h + w)         # conv1x1 (block-diag)
        + 2 * 2 * r_w * (h + w) * hw_n    # h/w strip expansion
        + 9 * 2 * r_w * r_w * hw_n        # conv3x3
        + 3 * 2 * r_w * hw_n              # MXU row reductions
        + 2 * 2 * t_w * r_w * hw_n        # group sum + gate broadcast
        + 12 * r_w * hw_n                 # elementwise
    )
    transcendentals = n_chunks_total * (r_w * (h + w) + t_w * hw_n + 3 * r_w)
    const_bytes = 4 * (p_hw.size + eh_pad.size + ew_pad.size + w1_bd.size
                       + w3_bd.size + g_sum.size + g_exp.size + scal.size
                       + mask9.size)
    bytes_accessed = 2 * rows_total * hw_n * 4 + const_bytes

    out = pl.pallas_call(
        kernel,
        out_shape=jax.ShapeDtypeStruct((rows_total, hw_n), x.dtype),
        grid_spec=pltpu.PrefetchScalarGridSpec(
            num_scalar_prefetch=0,
            grid=(n_tiles,),
            in_specs=[
                pl.BlockSpec((r, hw_n), lambda i: (i, 0)),   # group_x rows
                const_spec((hw_n, h + w)),                   # pooling matrix
                const_spec((h + w, hw_n)),                   # h-expansion
                const_spec((h + w, hw_n)),                   # w-expansion
                const_spec((r_w, r_w)),                      # conv1x1 block-diag
                const_spec((9, r_w, r_w)),                   # conv3x3 per-tap
                const_spec((t_w, r_w)),                      # group-sum
                const_spec((r_w, t_w)),                      # group-broadcast
                const_spec((r_w, 5)),                        # packed scalars
                const_spec((9, hw_n)),                       # tap validity masks
            ],
            out_specs=pl.BlockSpec((r, hw_n), lambda i: (i, 0)),
        ),
        compiler_params=pltpu.CompilerParams(
            dimension_semantics=("parallel",),
            vmem_limit_bytes=32 * 1024 * 1024),
        cost_estimate=pl.CostEstimate(
            flops=int(flops),
            transcendentals=int(transcendentals),
            bytes_accessed=int(bytes_accessed)),
    )(gx_flat, p_hw, eh_pad, ew_pad, w1_bd, w3_bd, g_sum, g_exp, scal, mask9)

    return out.reshape(b, c, h, w)


def ema_reference(x, w1, b1, w3, b3, gn_w, gn_b, groups=8):
    """Pure-JAX mirror of the PyTorch forward (for verification)."""
    hi = jax.lax.Precision.HIGHEST
    b, c, h, w = x.shape
    cg = c // groups
    gx = x.reshape(b * groups, cg, h, w)
    x_h = gx.mean(axis=3, keepdims=True)                        # (BG,cg,h,1)
    x_w = gx.mean(axis=2, keepdims=True).transpose(0, 1, 3, 2)  # (BG,cg,w,1)
    cat = jnp.concatenate([x_h, x_w], axis=2)                   # (BG,cg,h+w,1)
    hw = (jnp.einsum('oc,bcsl->bosl', w1, cat, precision=hi)
          + b1[None, :, None, None])
    xh, xw = hw[:, :, :h], hw[:, :, h:]
    m = gx * jax.nn.sigmoid(xh) * jax.nn.sigmoid(xw.transpose(0, 1, 3, 2))
    mu = m.mean(axis=(2, 3), keepdims=True)
    var = ((m - mu) ** 2).mean(axis=(2, 3), keepdims=True)
    x1 = ((m - mu) / jnp.sqrt(var + 1e-5)
          * gn_w[None, :, None, None] + gn_b[None, :, None, None])
    x2 = jax.lax.conv_general_dilated(
        gx, w3, window_strides=(1, 1), padding='SAME',
        dimension_numbers=('NCHW', 'OIHW', 'NCHW'),
        precision=hi) + b3[None, :, None, None]
    s1 = jax.nn.softmax(x1.mean(axis=(2, 3)), axis=-1)          # (BG, cg)
    s2 = jax.nn.softmax(x2.mean(axis=(2, 3)), axis=-1)
    x12 = x2.reshape(b * groups, cg, h * w)
    x22 = x1.reshape(b * groups, cg, h * w)
    wts = (jnp.einsum('bc,bcs->bs', s1, x12, precision=hi)
           + jnp.einsum('bc,bcs->bs', s2, x22, precision=hi)
           ).reshape(b * groups, 1, h, w)
    return (gx * jax.nn.sigmoid(wts)).reshape(b, c, h, w)


if __name__ == "__main__":
    # channels=32, factor(groups)=8 -> C/G = 4; batch=2, spatial=16x16.
    B, C, H, W = 2, 32, 16, 16
    GROUPS = 8
    CG = C // GROUPS

    key = jax.random.PRNGKey(0)
    kx, k1, k2, k3, k4 = jax.random.split(key, 5)

    x = jax.random.normal(kx, (B, C, H, W), dtype=jnp.float32)
    w1 = jax.random.normal(k1, (CG, CG), dtype=jnp.float32) * 0.2        # conv1x1
    b1 = jax.random.normal(k2, (CG,), dtype=jnp.float32) * 0.1
    w3 = jax.random.normal(k3, (CG, CG, 3, 3), dtype=jnp.float32) * 0.1  # conv3x3
    b3 = jax.random.normal(k4, (CG,), dtype=jnp.float32) * 0.1
    gn_w = jnp.ones((CG,), dtype=jnp.float32)                            # GN default
    gn_b = jnp.zeros((CG,), dtype=jnp.float32)

    _detect_roll_direction()   # one-time eager probe (outside jit); the kernel
                               # defaults to the documented jnp.roll convention.

    fwd = jax.jit(functools.partial(ema_forward, groups=GROUPS))
    out = jax.block_until_ready(fwd(x, w1, b1, w3, b3, gn_w, gn_b))

    ref = jax.block_until_ready(
        ema_reference(x, w1, b1, w3, b3, gn_w, gn_b, groups=GROUPS))

    assert out.shape == (B, C, H, W)
    assert bool(jnp.all(jnp.isfinite(out)))
    max_err = float(jnp.max(jnp.abs(out - ref)))
    assert jnp.allclose(out, ref, atol=5e-3, rtol=5e-3), max_err

    print("KERNEL_OK")
</pallas_src>

<mosaic_0001>
module attributes {stable_mosaic.version = 11 : i64} {
  func.func @probe_kernel(%arg0: memref<8x128xf32, #tpu.memory_space<vmem>>, %arg1: memref<8x128xf32, #tpu.memory_space<vmem>>) attributes {dimension_semantics = [], scalar_prefetch = 0 : i64, scratch_operands = 0 : i64, tpu.core_type = #tpu.core_type<tc>} {
    %c0 = arith.constant 0 : index
    %c0_0 = arith.constant 0 : index
    %0 = vector.load %arg0[%c0, %c0_0] : memref<8x128xf32, #tpu.memory_space<vmem>>, vector<8x128xf32>
    %c1_i32 = arith.constant 1 : i32
    %1 = tpu.dynamic_rotate %0 by %c1_i32 dim 1 : vector<8x128xf32>, i32 -> vector<8x128xf32>
    %c0_1 = arith.constant 0 : index
    %c0_2 = arith.constant 0 : index
    %2 = vector.load %arg1[%c0_1, %c0_2] : memref<8x128xf32, #tpu.memory_space<vmem>>, vector<8x128xf32>
    tpu.vector_store %arg1[%c0_1, %c0_2], %1 {strides = array<i32>} : memref<8x128xf32, #tpu.memory_space<vmem>>, vector<8x128xf32>,
    return
  }
}

</mosaic_0001>

<llo_original>
// kernel: tpu_custom_call.1
$region0: #{tpu_custom_call.1}
  #allocation0 [shape = 'u32[]', space=smem, size = 0x4, offset = 0x4, fixed_abs, tag = 'smem constant byte address 0x4 - core index']
  #allocation1 [shape = 'u32[72,128]{1,0:T(1,128)}', space=vmem, size = 0x9000, scoped, tag = 'internal scratch']
  %s0 = inlined_call_operand.hbm [shape: f32[8,128], index: 0, kind: input, shape index: {}]
  %s1 = inlined_call_operand.hbm [shape: f32[8,128], index: 1, kind: output, shape index: {}]
  %s2 = sld [smem:[#allocation0]]
  $region18: #{tpu_custom_call.1} parent=0
    _
  %s4 = ssub.s32 1, %s2
  %s5 = scalar_select 0, %s4, %s2
  $region1: #{tpu_custom_call.1} parent=0
    #allocation2 [shape = 'u8[4096]{0}', space=vmem, size = 0x1000, scoped, tag = 'input window, operand 0, single buffered']
    #allocation3 [shape = 's32[1]{0}', space=sflag, size = 0x4, scoped, tag = 'scoped memory for tpu_custom_call.1']
    #allocation4 [shape = 's32[1]{0}', space=sflag, size = 0x4, scoped, tag = 'scoped memory for tpu_custom_call.1']
    #allocation5 [shape = 'u8[4096]{0}', space=vmem, size = 0x1000, scoped, tag = 'output window, operand 0, single buffered']
    %6 = vsyncpa [#allocation3], 0
    %7 = vsyncpa [#allocation4], 0
    // Predicated region
    $region2: #{tpu_custom_call.1} parent=1 // pred_check
      _
    $region3: #{tpu_custom_call.1} parent=1 // pred_check_branch
      %9 = sbr.rel (0) target = $region5
    $region4: #{tpu_custom_call.1} parent=1 // pred_region
      %11 = vsyncadd [#allocation3], 0
      %s13 = sshll.u32 %s0, 4
      %s14 = int_to_ptr.hbm [resolvable:$true] %s13
      %s15 = sshll.u32 [#allocation2], 4
      %s16 = int_to_ptr.vmem [resolvable:$true] %s15
      %18 = dma.hbm_to_vmem [thread:$0]  %s14, 128, %s16, [#allocation3]
    $region5: #{tpu_custom_call.1} parent=1 // pred_fallthru
      _
    // Predicated region
    $region6: #{tpu_custom_call.1} parent=1 // pred_check
      _
    $region7: #{tpu_custom_call.1} parent=1 // pred_check_branch
      %20 = sbr.rel (0) target = $region9
    $region8: #{tpu_custom_call.1} parent=1 // pred_region
      %22 = dma.done [#allocation3], 128
    $region9: #{tpu_custom_call.1} parent=1 // pred_fallthru
      _
    %v23 = vld [vmem:[#allocation2] sm:$0xff]
    %24 = vrot.lane.b32.xlu0 %v23, 1
    %v25 = vpop.permute.xlu0 %24
    %26 = vst [vmem:[#allocation5] sm:$0xff] %v25
    // Predicated region
    $region10: #{tpu_custom_call.1} parent=1 // pred_check
      _
    $region11: #{tpu_custom_call.1} parent=1 // pred_check_branch
      %28 = sbr.rel (0) target = $region13
    $region12: #{tpu_custom_call.1} parent=1 // pred_region
      %30 = vsyncadd [#allocation4], 0
      %s32 = sshll.u32 [#allocation5], 4
      %s33 = int_to_ptr.vmem [resolvable:$true] %s32
      %s34 = sshll.u32 %s1, 4
      %s35 = int_to_ptr.hbm [resolvable:$true] %s34
      %37 = dma.vmem_to_hbm [thread:$0]  %s33, 128, %s35, [#allocation4]
    $region13: #{tpu_custom_call.1} parent=1 // pred_fallthru
      _
    // Predicated region
    $region14: #{tpu_custom_call.1} parent=1 // pred_check
      _
    $region15: #{tpu_custom_call.1} parent=1 // pred_check_branch
      %39 = sbr.rel (0) target = $region17
    $region16: #{tpu_custom_call.1} parent=1 // pred_region
      %41 = dma.done [#allocation4], 128
    $region17: #{tpu_custom_call.1} parent=1 // pred_fallthru
      _
    %42 = vsyncpa [#allocation3], 1
    %43 = vsyncpa [#allocation4], 1

</llo_original>
